<compile_context>
chip_gen: v7x
topology: tpu7x:2x2x1
jax: 0.10.0
libtpu: 0.0.40
codegen_flags: <defaults>
</compile_context>

<pallas_src>
import math

import jax
import jax.numpy as jnp
from jax.experimental import pallas as pl
from jax.experimental.pallas import tpu as pltpu  # noqa: F401  (no TPU-specific params needed at this size)


def _generator_kernel(comm_ref, node_ref, feat_ref, diag_ec_ref, genw_ref):
    """Single-invocation kernel; everything resident in VMEM, math batched over C.

    comm_ref    : (3, C, Nc, Nc) stacked [Pa, Ec, Wc]
    node_ref    : (3, C, R, R)   stacked [Pb, Ev, W_pie]
    feat_ref    : (C, R, L)
    diag_ec_ref : (C, Nc)        diag(Pa @ Ec @ Wc)   (del_EC is diagonal)
    genw_ref    : (C, R, R)      row-vs-row Pearson correlation of F = 0.3*del_EV@feat + feat
    """
    pa, ec, wc = comm_ref[0], comm_ref[1], comm_ref[2]
    pb, ev, w = node_ref[0], node_ref[1], node_ref[2]
    feat = feat_ref[...]

    bdims = ((0,), (0,))  # batch over the community axis

    # ---- community entropy increment: diag(Pa @ (Ec @ Wc)) ----
    # (Ec @ Wc)^T computed directly by folding the transpose into the contraction
    # (contract wc axis 1 with ec axis 2) -> no explicit XLU transpose.
    bt_c = jax.lax.dot_general(wc, ec, (((1,), (2,)), bdims),
                               preferred_element_type=jnp.float32)       # (C, Nc, Nc)
    diag_ec_ref[...] = jnp.sum(pa * bt_c, axis=-1)                       # (C, Nc)

    # ---- node entropy increment: diag(Pb @ (Ev @ W_pie)) ----
    bt_v = jax.lax.dot_general(w, ev, (((1,), (2,)), bdims),
                               preferred_element_type=jnp.float32)       # (C, R, R)
    diag_ev = jnp.sum(pb * bt_v, axis=-1, keepdims=True)                 # (C, R, 1)

    # del_EV is diagonal -> F = 0.3*del_EV@feat + feat is a per-row scale of feat.
    f = feat * (1.0 + 0.3 * diag_ev)                                     # (C, R, L)
    fc = f - jnp.mean(f, axis=-1, keepdims=True)

    # ---- pairwise Pearson correlation of the rows of F ----
    # One batched MXU contraction over L gives the Gram matrix of centered rows.
    g = jax.lax.dot_general(fc, fc, (((2,), (2,)), bdims),
                            preferred_element_type=jnp.float32)          # (C, R, R)

    # Row variances taken from the Gram diagonal itself so the normalization is
    # consistent with the off-diagonals (diag(W) == 1 up to rounding).  Both the
    # column (R,1) and row (1,R) layouts fall straight out of keepdims reductions,
    # so no transpose / relayout of a column vector is needed.
    r = g.shape[-1]
    eye_r = (jax.lax.broadcasted_iota(jnp.int32, (r, r), 0)
             == jax.lax.broadcasted_iota(jnp.int32, (r, r), 1)).astype(jnp.float32)
    g_eye = g * eye_r
    inv_col = jax.lax.rsqrt(jnp.sum(g_eye, axis=-1, keepdims=True))      # (C, R, 1)
    inv_row = jax.lax.rsqrt(jnp.sum(g_eye, axis=-2, keepdims=True))      # (C, 1, R)
    # NOTE: a row that is constant after centering has var == 0 -> inf/NaN,
    # exactly matching the np.corrcoef reference (no epsilon added on purpose).
    genw_ref[...] = g * inv_col * inv_row


@jax.jit
def generator_forward(pa, ec, wc, pb, ev, w_pie, feat):
    c, nc, _ = pa.shape
    _, r, l = feat.shape

    # Pack operands so the kernel receives 3 arrays instead of 7: at ~20 KiB total
    # I/O the per-array fixed DMA/launch cost dominates, so fewer transfers win.
    comm = jnp.stack([pa, ec, wc], axis=0).astype(jnp.float32)      # (3, C, Nc, Nc)
    node = jnp.stack([pb, ev, w_pie], axis=0).astype(jnp.float32)   # (3, C, R, R)

    diag_ec, gen_w = pl.pallas_call(
        _generator_kernel,
        out_shape=(jax.ShapeDtypeStruct((c, nc), jnp.float32),   # diag of del_EC
                   jax.ShapeDtypeStruct((c, r, r), jnp.float32)),  # generator_W
        # No grid: whole working set is a few KiB and lives in VMEM once.
        # TODO(synk): if C / R scale up, add grid=(C,) with
        # dimension_semantics=("parallel",) so both v7x TensorCores are used.
    )(comm, node, feat.astype(jnp.float32))

    # del_EC is diagonal: scatter and the in-place `Ec = del_EC + Ec` update are
    # cheap lane-sparse writes better left to fused XLA than to kernel vst.msk.
    del_ec = diag_ec[:, :, None] * jnp.eye(nc, dtype=jnp.float32)
    ec_new = ec + del_ec
    return del_ec, ec_new, gen_w


if __name__ == "__main__":
    key = jax.random.PRNGKey(0)
    keys = jax.random.split(key, 10)

    # Module parameters (declared in __init__ but unused in forward); init for fidelity only.
    beta = jax.random.normal(keys[0], (48, 48), jnp.float32)
    tdv = 1.0 / math.sqrt(70.0)
    alpha = jax.random.uniform(keys[1], (164, 70), jnp.float32, minval=-tdv, maxval=tdv)

    # Small synthetic shapes: 3 communities, 8 sub-communities, 16 nodes (rows), 32 feature cols.
    C, NC, R, L = 3, 8, 16, 32
    pa = jax.random.normal(keys[2], (C, NC, NC), jnp.float32)
    ec = jax.random.normal(keys[3], (C, NC, NC), jnp.float32)
    wc = jax.random.normal(keys[4], (C, NC, NC), jnp.float32)
    pb = jax.random.normal(keys[5], (C, R, R), jnp.float32)
    ev = jax.random.normal(keys[6], (C, R, R), jnp.float32)
    w_pie = jax.random.normal(keys[7], (C, R, R), jnp.float32)
    feat = jax.random.normal(keys[8], (C, R, L), jnp.float32)

    del_ec, ec_new, gen_w = generator_forward(pa, ec, wc, pb, ev, w_pie, feat)
    jax.block_until_ready(gen_w)

    # Pure-JAX reference (same math as the NumPy loops in forward()), full precision.
    HP = jax.lax.Precision.HIGHEST

    def ref_one(pa_i, ec_i, wc_i, pb_i, ev_i, w_i, feat_i):
        del_ec_i = jnp.dot(pa_i, jnp.dot(ec_i, wc_i, precision=HP), precision=HP) \
            * jnp.eye(NC, dtype=jnp.float32)
        del_ev_i = jnp.dot(pb_i, jnp.dot(ev_i, w_i, precision=HP), precision=HP) \
            * jnp.eye(R, dtype=jnp.float32)
        f_i = 0.3 * jnp.dot(del_ev_i, feat_i, precision=HP) + feat_i
        fc = f_i - f_i.mean(-1, keepdims=True)
        g = jnp.dot(fc, fc.T, precision=HP)
        d = jnp.sqrt(jnp.diag(g))
        return del_ec_i, del_ec_i + ec_i, g / jnp.outer(d, d)

    ref_del_ec, ref_ec_new, ref_gen_w = jax.vmap(ref_one)(pa, ec, wc, pb, ev, w_pie, feat)
    assert jnp.allclose(del_ec, ref_del_ec, atol=5e-3, rtol=5e-3)
    assert jnp.allclose(ec_new, ref_ec_new, atol=5e-3, rtol=5e-3)
    assert jnp.allclose(gen_w, ref_gen_w, atol=5e-3, rtol=5e-3)

    print("KERNEL_OK")
</pallas_src>

<mosaic_0001>
module attributes {stable_mosaic.version = 11 : i64} {
  func.func @_generator_kernel(%arg0: memref<3x3x8x8xf32, #tpu.memory_space<vmem>>, %arg1: memref<3x3x16x16xf32, #tpu.memory_space<vmem>>, %arg2: memref<3x16x32xf32, #tpu.memory_space<vmem>>, %arg3: memref<3x8xf32, #tpu.memory_space<vmem>>, %arg4: memref<3x16x16xf32, #tpu.memory_space<vmem>>) attributes {dimension_semantics = [], scalar_prefetch = 0 : i64, scratch_operands = 0 : i64, tpu.core_type = #tpu.core_type<tc>} {
    %c0 = arith.constant 0 : index
    %c0_0 = arith.constant 0 : index
    %c0_1 = arith.constant 0 : index
    %c0_2 = arith.constant 0 : index
    %0 = vector.load %arg0[%c0, %c0_0, %c0_1, %c0_2] : memref<3x3x8x8xf32, #tpu.memory_space<vmem>>, vector<1x3x8x8xf32>
    %1 = vector.shape_cast %0 : vector<1x3x8x8xf32> to vector<3x8x8xf32>
    %c1 = arith.constant 1 : index
    %c0_3 = arith.constant 0 : index
    %c0_4 = arith.constant 0 : index
    %c0_5 = arith.constant 0 : index
    %2 = vector.load %arg0[%c1, %c0_3, %c0_4, %c0_5] : memref<3x3x8x8xf32, #tpu.memory_space<vmem>>, vector<1x3x8x8xf32>
    %3 = vector.shape_cast %2 : vector<1x3x8x8xf32> to vector<3x8x8xf32>
    %c2 = arith.constant 2 : index
    %c0_6 = arith.constant 0 : index
    %c0_7 = arith.constant 0 : index
    %c0_8 = arith.constant 0 : index
    %4 = vector.load %arg0[%c2, %c0_6, %c0_7, %c0_8] : memref<3x3x8x8xf32, #tpu.memory_space<vmem>>, vector<1x3x8x8xf32>
    %5 = vector.shape_cast %4 : vector<1x3x8x8xf32> to vector<3x8x8xf32>
    %c0_9 = arith.constant 0 : index
    %c0_10 = arith.constant 0 : index
    %c0_11 = arith.constant 0 : index
    %c0_12 = arith.constant 0 : index
    %6 = vector.load %arg1[%c0_9, %c0_10, %c0_11, %c0_12] : memref<3x3x16x16xf32, #tpu.memory_space<vmem>>, vector<1x3x16x16xf32>
    %7 = vector.shape_cast %6 : vector<1x3x16x16xf32> to vector<3x16x16xf32>
    %c1_13 = arith.constant 1 : index
    %c0_14 = arith.constant 0 : index
    %c0_15 = arith.constant 0 : index
    %c0_16 = arith.constant 0 : index
    %8 = vector.load %arg1[%c1_13, %c0_14, %c0_15, %c0_16] : memref<3x3x16x16xf32, #tpu.memory_space<vmem>>, vector<1x3x16x16xf32>
    %9 = vector.shape_cast %8 : vector<1x3x16x16xf32> to vector<3x16x16xf32>
    %c2_17 = arith.constant 2 : index
    %c0_18 = arith.constant 0 : index
    %c0_19 = arith.constant 0 : index
    %c0_20 = arith.constant 0 : index
    %10 = vector.load %arg1[%c2_17, %c0_18, %c0_19, %c0_20] : memref<3x3x16x16xf32, #tpu.memory_space<vmem>>, vector<1x3x16x16xf32>
    %11 = vector.shape_cast %10 : vector<1x3x16x16xf32> to vector<3x16x16xf32>
    %c0_21 = arith.constant 0 : index
    %c0_22 = arith.constant 0 : index
    %c0_23 = arith.constant 0 : index
    %12 = vector.load %arg2[%c0_21, %c0_22, %c0_23] : memref<3x16x32xf32, #tpu.memory_space<vmem>>, vector<3x16x32xf32>
    %cst = arith.constant dense<0.000000e+00> : vector<3x8x8xf32>
    %13 = tpu.matmul %5, %3, %cst {dimension_numbers = #tpu.dot_dimension_numbers<[1], [2], [2], [1], [0, 0, 0, 2, 1, 1], [0], [0]>} : vector<3x8x8xf32>, vector<3x8x8xf32>, vector<3x8x8xf32> -> vector<3x8x8xf32>
    %14 = arith.mulf %1, %13 : vector<3x8x8xf32>
    %cst_24 = arith.constant dense<0.000000e+00> : vector<3x8xf32>
    %15 = vector.multi_reduction <add>, %14, %cst_24 [2] : vector<3x8x8xf32> to vector<3x8xf32>
    %c0_25 = arith.constant 0 : index
    %c0_26 = arith.constant 0 : index
    %16 = vector.load %arg3[%c0_25, %c0_26] : memref<3x8xf32, #tpu.memory_space<vmem>>, vector<3x8xf32>
    tpu.vector_store %arg3[%c0_25, %c0_26], %15 {strides = array<i32>} : memref<3x8xf32, #tpu.memory_space<vmem>>, vector<3x8xf32>,
    %cst_27 = arith.constant dense<0.000000e+00> : vector<3x16x16xf32>
    %17 = tpu.matmul %11, %9, %cst_27 {dimension_numbers = #tpu.dot_dimension_numbers<[1], [2], [2], [1], [0, 0, 0, 2, 1, 1], [0], [0]>} : vector<3x16x16xf32>, vector<3x16x16xf32>, vector<3x16x16xf32> -> vector<3x16x16xf32>
    %18 = arith.mulf %7, %17 : vector<3x16x16xf32>
    %cst_28 = arith.constant dense<0.000000e+00> : vector<3x16xf32>
    %19 = vector.multi_reduction <add>, %18, %cst_28 [2] : vector<3x16x16xf32> to vector<3x16xf32>
    %20 = vector.shape_cast %19 : vector<3x16xf32> to vector<3x16x1xf32>
    %cst_29 = arith.constant 3.000000e-01 : f32
    %21 = vector.broadcast %cst_29 : f32 to vector<3x16x1xf32>
    %22 = arith.mulf %21, %20 : vector<3x16x1xf32>
    %cst_30 = arith.constant 1.000000e+00 : f32
    %23 = vector.broadcast %cst_30 : f32 to vector<3x16x1xf32>
    %24 = arith.addf %23, %22 : vector<3x16x1xf32>
    %25 = vector.broadcast %24 : vector<3x16x1xf32> to vector<3x16x32xf32>
    %26 = arith.mulf %12, %25 : vector<3x16x32xf32>
    %cst_31 = arith.constant dense<0.000000e+00> : vector<3x16xf32>
    %27 = vector.multi_reduction <add>, %26, %cst_31 [2] : vector<3x16x32xf32> to vector<3x16xf32>
    %28 = vector.shape_cast %27 : vector<3x16xf32> to vector<3x16x1xf32>
    %cst_32 = arith.constant 3.200000e+01 : f32
    %29 = vector.broadcast %cst_32 : f32 to vector<3x16x1xf32>
    %30 = arith.divf %28, %29 : vector<3x16x1xf32>
    %31 = vector.broadcast %30 : vector<3x16x1xf32> to vector<3x16x32xf32>
    %32 = arith.subf %26, %31 : vector<3x16x32xf32>
    %cst_33 = arith.constant dense<0.000000e+00> : vector<3x16x16xf32>
    %33 = tpu.matmul %32, %32, %cst_33 {dimension_numbers = #tpu.dot_dimension_numbers<[2], [2], [1], [1], [0, 0, 0, 1, 1, 1], [0], [0]>} : vector<3x16x32xf32>, vector<3x16x32xf32>, vector<3x16x16xf32> -> vector<3x16x16xf32>
    %34 = tpu.iota {dimensions = array<i32: 0>} : vector<16x16xi32>
    %35 = tpu.iota {dimensions = array<i32: 1>} : vector<16x16xi32>
    %36 = arith.cmpi eq, %34, %35 : vector<16x16xi32>
    %37 = arith.extui %36 : vector<16x16xi1> to vector<16x16xi32>
    %38 = arith.sitofp %37 : vector<16x16xi32> to vector<16x16xf32>
    %39 = vector.shape_cast %38 : vector<16x16xf32> to vector<1x16x16xf32>
    %40 = vector.broadcast %39 : vector<1x16x16xf32> to vector<3x16x16xf32>
    %41 = arith.mulf %33, %40 : vector<3x16x16xf32>
    %cst_34 = arith.constant dense<0.000000e+00> : vector<3x16xf32>
    %42 = vector.multi_reduction <add>, %41, %cst_34 [2] : vector<3x16x16xf32> to vector<3x16xf32>
    %43 = vector.shape_cast %42 : vector<3x16xf32> to vector<3x16x1xf32>
    %44 = math.rsqrt %43 : vector<3x16x1xf32>
    %cst_35 = arith.constant dense<0.000000e+00> : vector<3x16xf32>
    %45 = vector.multi_reduction <add>, %41, %cst_35 [1] : vector<3x16x16xf32> to vector<3x16xf32>
    %46 = vector.shape_cast %45 : vector<3x16xf32> to vector<3x1x16xf32>
    %47 = math.rsqrt %46 : vector<3x1x16xf32>
    %48 = vector.broadcast %44 : vector<3x16x1xf32> to vector<3x16x16xf32>
    %49 = arith.mulf %33, %48 : vector<3x16x16xf32>
    %50 = vector.broadcast %47 : vector<3x1x16xf32> to vector<3x16x16xf32>
    %51 = arith.mulf %49, %50 : vector<3x16x16xf32>
    %c0_36 = arith.constant 0 : index
    %c0_37 = arith.constant 0 : index
    %c0_38 = arith.constant 0 : index
    %52 = vector.load %arg4[%c0_36, %c0_37, %c0_38] : memref<3x16x16xf32, #tpu.memory_space<vmem>>, vector<3x16x16xf32>
    tpu.vector_store %arg4[%c0_36, %c0_37, %c0_38], %51 {strides = array<i32>} : memref<3x16x16xf32, #tpu.memory_space<vmem>>, vector<3x16x16xf32>,
    return
  }
}

</mosaic_0001>

<llo_original>
// kernel: generator_forward.1
$region0: #{generator_forward.1}
  #allocation0 [shape = 'u32[]', space=smem, size = 0x4, offset = 0x4, fixed_abs, tag = 'smem constant byte address 0x4 - core index']
  #allocation1 [shape = 'u32[144,128]{1,0:T(1,128)}', space=vmem, size = 0x12000, scoped, tag = 'internal scratch']
  %s0 = inlined_call_operand.vmem [shape: f32[3,3,8,8], index: 0, kind: input, shape index: {}]
  %s1 = inlined_call_operand.vmem [shape: f32[3,3,16,16], index: 1, kind: input, shape index: {}]
  %s2 = inlined_call_operand.vmem [shape: f32[3,16,32], index: 2, kind: input, shape index: {}]
  %s3 = inlined_call_operand.vmem [shape: f32[3,8], index: 3, kind: output, shape index: {0}]
  %s4 = inlined_call_operand.hbm [shape: f32[3,16,16], index: 4, kind: output, shape index: {1}]
  %5 = xla_tuple %s3, %s4
  %s6 = sld [smem:[#allocation0]]
  $region30: #{generator_forward.1} parent=0
    _
  %s8 = ssub.s32 1, %s6
  %s9 = scalar_select 0, %s8, %s6
  $region1: #{generator_forward.1} parent=0
    #allocation2 [shape = 'u8[24576]{0}', space=vmem, size = 0x6000, scoped, tag = 'output window, operand 1, single buffered']
    #allocation3 [shape = 's32[1]{0}', space=sflag, size = 0x4, scoped, tag = 'scoped memory for generator_forward.1']
    %10 = vsyncpa [#allocation3], 0
    // Predicated region
    $region2: #{generator_forward.1} parent=1 // pred_check
      _
    $region3: #{generator_forward.1} parent=1 // pred_check_branch
      %12 = sbr.rel (0) target = $region5
    $region4: #{generator_forward.1} parent=1 // pred_region
      _
    $region5: #{generator_forward.1} parent=1 // pred_fallthru
      _
    // Predicated region
    $region6: #{generator_forward.1} parent=1 // pred_check
      _
    $region7: #{generator_forward.1} parent=1 // pred_check_branch
      %14 = sbr.rel (0) target = $region9
    $region8: #{generator_forward.1} parent=1 // pred_region
      _
    $region9: #{generator_forward.1} parent=1 // pred_fallthru
      _
    // Predicated region
    $region10: #{generator_forward.1} parent=1 // pred_check
      _
    $region11: #{generator_forward.1} parent=1 // pred_check_branch
      %16 = sbr.rel (0) target = $region13
    $region12: #{generator_forward.1} parent=1 // pred_region
      _
    $region13: #{generator_forward.1} parent=1 // pred_fallthru
      _
    %v17 = vld [vmem:[%s0] sm:$0xff]
    %v18 = vld [vmem:[%s0 + $0x8] sm:$0xff]
    %v19 = vld [vmem:[%s0 + $0x10] sm:$0xff]
    %s20 = scalar_lea.vmem %s0, 24
    %v21 = vld [vmem:[%s20] sm:$0xff]
    %v22 = vld [vmem:[%s20 + $0x8] sm:$0xff]
    %v23 = vld [vmem:[%s20 + $0x10] sm:$0xff]
    %s24 = scalar_lea.vmem %s0, 48
    %v25 = vld [vmem:[%s24] sm:$0xff]
    %v26 = vld [vmem:[%s24 + $0x8] sm:$0xff]
    %v27 = vld [vmem:[%s24 + $0x10] sm:$0xff]
    %v28 = vld [vmem:[%s1] sm:$0xff]
    %v29 = vld [vmem:[%s1 + $0x8] sm:$0xff]
    %v30 = vld [vmem:[%s1 + $0x10] sm:$0xff]
    %v31 = vld [vmem:[%s1 + $0x18] sm:$0xff]
    %v32 = vld [vmem:[%s1 + $0x20] sm:$0xff]
    %v33 = vld [vmem:[%s1 + $0x28] sm:$0xff]
    %s34 = scalar_lea.vmem %s1, 48
    %v35 = vld [vmem:[%s34] sm:$0xff]
    %v36 = vld [vmem:[%s34 + $0x8] sm:$0xff]
    %v37 = vld [vmem:[%s34 + $0x10] sm:$0xff]
    %v38 = vld [vmem:[%s34 + $0x18] sm:$0xff]
    %v39 = vld [vmem:[%s34 + $0x20] sm:$0xff]
    %v40 = vld [vmem:[%s34 + $0x28] sm:$0xff]
    %s41 = scalar_lea.vmem %s1, 96
    %v42 = vld [vmem:[%s41] sm:$0xff]
    %v43 = vld [vmem:[%s41 + $0x8] sm:$0xff]
    %v44 = vld [vmem:[%s41 + $0x10] sm:$0xff]
    %v45 = vld [vmem:[%s41 + $0x18] sm:$0xff]
    %v46 = vld [vmem:[%s41 + $0x20] sm:$0xff]
    %v47 = vld [vmem:[%s41 + $0x28] sm:$0xff]
    %v48 = vld [vmem:[%s2] sm:$0xff]
    %v49 = vld [vmem:[%s2 + $0x8] sm:$0xff]
    %v50 = vld [vmem:[%s2 + $0x10] sm:$0xff]
    %v51 = vld [vmem:[%s2 + $0x18] sm:$0xff]
    %v52 = vld [vmem:[%s2 + $0x20] sm:$0xff]
    %v53 = vld [vmem:[%s2 + $0x28] sm:$0xff]
    %54 = vxpose.xlu0.b32.start [1/16] %v25, 128
    %55 = vxpose.xlu0.b32.cont [2/16] 0.0, 128
    %56 = vxpose.xlu0.b32.cont [3/16] 0.0, 128
    %57 = vxpose.xlu0.b32.cont [4/16] 0.0, 128
    %58 = vxpose.xlu0.b32.cont [5/16] 0.0, 128
    %59 = vxpose.xlu0.b32.cont [6/16] 0.0, 128
    %60 = vxpose.xlu0.b32.cont [7/16] 0.0, 128
    %61 = vxpose.xlu0.b32.cont [8/16] 0.0, 128
    %62 = vxpose.xlu0.b32.cont [9/16] 0.0, 128
    %63 = vxpose.xlu0.b32.cont [10/16] 0.0, 128
    %64 = vxpose.xlu0.b32.cont [11/16] 0.0, 128
    %65 = vxpose.xlu0.b32.cont [12/16] 0.0, 128
    %66 = vxpose.xlu0.b32.cont [13/16] 0.0, 128
    %67 = vxpose.xlu0.b32.cont [14/16] 0.0, 128
    %68 = vxpose.xlu0.b32.cont [15/16] 0.0, 128
    %69 = vxpose.xlu0.b32.end [16/16] 0.0, 128
    %v70 = vpop.trf.xlu0
    %v71 = vpop.trf.xlu0
    %v72 = vpop.trf.xlu0
    %v73 = vpop.trf.xlu0
    %v74 = vpop.trf.xlu0
    %v75 = vpop.trf.xlu0
    %v76 = vpop.trf.xlu0
    %v77 = vpop.trf.xlu0
    %v78 = vpop.trf.xlu0
    %v79 = vpop.trf.xlu0
    %v80 = vpop.trf.xlu0
    %v81 = vpop.trf.xlu0
    %v82 = vpop.trf.xlu0
    %v83 = vpop.trf.xlu0
    %v84 = vpop.trf.xlu0
    %v85 = vpop.trf.xlu0
    %vm86 = vcmask 64512
    %v88 = vsel %vm86, %v70, 0
    %v91 = vsel %vm86, %v21, 0
    %93 = vmatprep.subr.mxu0 0.0
    %94 = vmatpush1.xpose.msra.mxu0 %v91
    %95 = vmatprep.subr.mxu0 0.0
    %96 = vmatpush1.xpose.msra.mxu0 0.0
    %97 = vmatprep.subr.mxu0 0.0
    %98 = vmatpush1.xpose.msra.mxu0 0.0
    %99 = vmatprep.subr.mxu0 0.0
    %100 = vmatpush1.xpose.msra.mxu0 0.0
    %101 = vmatprep.subr.mxu0 0.0
    %102 = vmatpush1.xpose.msra.mxu0 0.0
    %103 = vmatprep.subr.mxu0 0.0
    %104 = vmatpush1.xpose.msra.mxu0 0.0
    %105 = vmatprep.subr.mxu0 0.0
    %106 = vmatpush1.xpose.msra.mxu0 0.0
    %107 = vmatprep.subr.mxu0 0.0
    %108 = vmatpush1.xpose.msra.mxu0 0.0
    %109 = vmatprep.subr.mxu0 0.0
    %110 = vmatpush1.xpose.msra.mxu0 0.0
    %111 = vmatprep.subr.mxu0 0.0
    %112 = vmatpush1.xpose.msra.mxu0 0.0
    %113 = vmatprep.subr.mxu0 0.0
    %114 = vmatpush1.xpose.msra.mxu0 0.0
    %115 = vmatprep.subr.mxu0 0.0
    %116 = vmatpush1.xpose.msra.mxu0 0.0
    %117 = vmatprep.subr.mxu0 0.0
    %118 = vmatpush1.xpose.msra.mxu0 0.0
    %119 = vmatprep.subr.mxu0 0.0
    %120 = vmatpush1.xpose.msra.mxu0 0.0
    %121 = vmatprep.subr.mxu0 0.0
    %122 = vmatpush1.xpose.msra.mxu0 0.0
    %123 = vmatprep.subr.mxu0 0.0
    %124 = vmatpush1.xpose.msra.mxu0 0.0
    %125 = vmatprep.subr.mxu0 0.0
    %126 = vmatpush1.xpose.msra.mxu0 0.0
    %127 = vmatprep.subr.mxu0 0.0
    %128 = vmatpush1.xpose.msra.mxu0 0.0
    %129 = vmatprep.subr.mxu0 0.0
    %130 = vmatpush1.xpose.msra.mxu0 0.0
    %131 = vmatprep.subr.mxu0 0.0
    %132 = vmatpush1.xpose.msra.mxu0 0.0
    %133 = vmatprep.subr.mxu0 0.0
    %134 = vmatpush1.xpose.msra.mxu0 0.0
    %135 = vmatprep.subr.mxu0 0.0
    %136 = vmatpush1.xpose.msra.mxu0 0.0
    %137 = vmatprep.subr.mxu0 0.0
    %138 = vmatpush1.xpose.msra.mxu0 0.0
    %139 = vmatprep.subr.mxu0 0.0
    %140 = vmatpush1.xpose.msra.mxu0 0.0
    %141 = vmatprep.subr.mxu0 0.0
    %142 = vmatpush1.xpose.msra.mxu0 0.0
    %143 = vmatprep.subr.mxu0 0.0
    %144 = vmatpush1.xpose.msra.mxu0 0.0
    %145 = vmatprep.subr.mxu0 0.0
    %146 = vmatpush1.xpose.msra.mxu0 0.0
    %147 = vmatprep.subr.mxu0 0.0
    %148 = vmatpush1.xpose.msra.mxu0 0.0
    %149 = vmatprep.subr.mxu0 0.0
    %150 = vmatpush1.xpose.msra.mxu0 0.0
    %151 = vmatprep.subr.mxu0 0.0
    %152 = vmatpush1.xpose.msra.mxu0 0.0
    %153 = vmatprep.subr.mxu0 0.0
    %154 = vmatpush1.xpose.msra.mxu0 0.0
    %155 = vmatprep.subr.mxu0 0.0
    %156 = vmatpush1.xpose.msra.mxu0 0.0
    %157 = vmatprep.mubr.f32.mxu0 0.0
    %158 = vmatmul.mubr.f32.gmra.mrb[0].mxu0 %v88
    %v159 = vpop.f32.mrb[0].mxu0
    %v160 = vadd.f32 0.0, %v159
    %v161 = vpop.f32.mrb[0].mxu0
    %162 = vdwg.mxu0
    %163 = vxpose.xlu0.b32.start [1/16] %v26, 128
    %164 = vxpose.xlu0.b32.cont [2/16] 0.0, 128
    %165 = vxpose.xlu0.b32.cont [3/16] 0.0, 128
    %166 = vxpose.xlu0.b32.cont [4/16] 0.0, 128
    %167 = vxpose.xlu0.b32.cont [5/16] 0.0, 128
    %168 = vxpose.xlu0.b32.cont [6/16] 0.0, 128
    %169 = vxpose.xlu0.b32.cont [7/16] 0.0, 128
    %170 = vxpose.xlu0.b32.cont [8/16] 0.0, 128
    %171 = vxpose.xlu0.b32.cont [9/16] 0.0, 128
    %172 = vxpose.xlu0.b32.cont [10/16] 0.0, 128
    %173 = vxpose.xlu0.b32.cont [11/16] 0.0, 128
    %174 = vxpose.xlu0.b32.cont [12/16] 0.0, 128
    %175 = vxpose.xlu0.b32.cont [13/16] 0.0, 128
    %176 = vxpose.xlu0.b32.cont [14/16] 0.0, 128
    %177 = vxpose.xlu0.b32.cont [15/16] 0.0, 128
    %178 = vxpose.xlu0.b32.end [16/16] 0.0, 128
    %v179 = vpop.trf.xlu0
    %v180 = vpop.trf.xlu0
    %v181 = vpop.trf.xlu0
    %v182 = vpop.trf.xlu0
    %v183 = vpop.trf.xlu0
    %v184 = vpop.trf.xlu0
    %v185 = vpop.trf.xlu0
    %v186 = vpop.trf.xlu0
    %v187 = vpop.trf.xlu0
    %v188 = vpop.trf.xlu0
    %v189 = vpop.trf.xlu0
    %v190 = vpop.trf.xlu0
    %v191 = vpop.trf.xlu0
    %v192 = vpop.trf.xlu0
    %v193 = vpop.trf.xlu0
    %v194 = vpop.trf.xlu0
    %v196 = vsel %vm86, %v179, 0
    %v199 = vsel %vm86, %v22, 0
    %201 = vmatprep.subr.mxu0 0.0
    %202 = vmatpush1.xpose.msra.mxu0 %v199
    %203 = vmatprep.subr.mxu0 0.0
    %204 = vmatpush1.xpose.msra.mxu0 0.0
    %205 = vmatprep.subr.mxu0 0.0
    %206 = vmatpush1.xpose.msra.mxu0 0.0
    %207 = vmatprep.subr.mxu0 0.0
    %208 = vmatpush1.xpose.msra.mxu0 0.0
    %209 = vmatprep.subr.mxu0 0.0
    %210 = vmatpush1.xpose.msra.mxu0 0.0
    %211 = vmatprep.subr.mxu0 0.0
    %212 = vmatpush1.xpose.msra.mxu0 0.0
    %213 = vmatprep.subr.mxu0 0.0
    %214 = vmatpush1.xpose.msra.mxu0 0.0
    %215 = vmatprep.subr.mxu0 0.0
    %216 = vmatpush1.xpose.msra.mxu0 0.0
    %217 = vmatprep.subr.mxu0 0.0
    %218 = vmatpush1.xpose.msra.mxu0 0.0
    %219 = vmatprep.subr.mxu0 0.0
    %220 = vmatpush1.xpose.msra.mxu0 0.0
    %221 = vmatprep.subr.mxu0 0.0
    %222 = vmatpush1.xpose.msra.mxu0 0.0
    %223 = vmatprep.subr.mxu0 0.0
    %224 = vmatpush1.xpose.msra.mxu0 0.0
    %225 = vmatprep.subr.mxu0 0.0
    %226 = vmatpush1.xpose.msra.mxu0 0.0
    %227 = vmatprep.subr.mxu0 0.0
    %228 = vmatpush1.xpose.msra.mxu0 0.0
    %229 = vmatprep.subr.mxu0 0.0
    %230 = vmatpush1.xpose.msra.mxu0 0.0
    %231 = vmatprep.subr.mxu0 0.0
    %232 = vmatpush1.xpose.msra.mxu0 0.0
    %233 = vmatprep.subr.mxu0 0.0
    %234 = vmatpush1.xpose.msra.mxu0 0.0
    %235 = vmatprep.subr.mxu0 0.0
    %236 = vmatpush1.xpose.msra.mxu0 0.0
    %237 = vmatprep.subr.mxu0 0.0
    %238 = vmatpush1.xpose.msra.mxu0 0.0
    %239 = vmatprep.subr.mxu0 0.0
    %240 = vmatpush1.xpose.msra.mxu0 0.0
    %241 = vmatprep.subr.mxu0 0.0
    %242 = vmatpush1.xpose.msra.mxu0 0.0
    %243 = vmatprep.subr.mxu0 0.0
    %244 = vmatpush1.xpose.msra.mxu0 0.0
    %245 = vmatprep.subr.mxu0 0.0
    %246 = vmatpush1.xpose.msra.mxu0 0.0
    %247 = vmatprep.subr.mxu0 0.0
    %248 = vmatpush1.xpose.msra.mxu0 0.0
    %249 = vmatprep.subr.mxu0 0.0
    %250 = vmatpush1.xpose.msra.mxu0 0.0
    %251 = vmatprep.subr.mxu0 0.0
    %252 = vmatpush1.xpose.msra.mxu0 0.0
    %253 = vmatprep.subr.mxu0 0.0
    %254 = vmatpush1.xpose.msra.mxu0 0.0
    %255 = vmatprep.subr.mxu0 0.0
    %256 = vmatpush1.xpose.msra.mxu0 0.0
    %257 = vmatprep.subr.mxu0 0.0
    %258 = vmatpush1.xpose.msra.mxu0 0.0
    %259 = vmatprep.subr.mxu0 0.0
    %260 = vmatpush1.xpose.msra.mxu0 0.0
    %261 = vmatprep.subr.mxu0 0.0
    %262 = vmatpush1.xpose.msra.mxu0 0.0
    %263 = vmatprep.subr.mxu0 0.0
    %264 = vmatpush1.xpose.msra.mxu0 0.0
    %265 = vmatprep.mubr.f32.mxu0 0.0
    %266 = vmatmul.mubr.f32.gmra.mrb[0].mxu0 %v196
    %v267 = vpop.f32.mrb[0].mxu0
    %v268 = vadd.f32 0.0, %v267
    %v269 = vpop.f32.mrb[0].mxu0
    %270 = vdwg.mxu0
    %271 = vxpose.xlu0.b32.start [1/16] %v27, 128
    %272 = vxpose.xlu0.b32.cont [2/16] 0.0, 128
    %273 = vxpose.xlu0.b32.cont [3/16] 0.0, 128
    %274 = vxpose.xlu0.b32.cont [4/16] 0.0, 128
    %275 = vxpose.xlu0.b32.cont [5/16] 0.0, 128
    %276 = vxpose.xlu0.b32.cont [6/16] 0.0, 128
    %277 = vxpose.xlu0.b32.cont [7/16] 0.0, 128
    %278 = vxpose.xlu0.b32.cont [8/16] 0.0, 128
    %279 = vxpose.xlu0.b32.cont [9/16] 0.0, 128
    %280 = vxpose.xlu0.b32.cont [10/16] 0.0, 128
    %281 = vxpose.xlu0.b32.cont [11/16] 0.0, 128
    %282 = vxpose.xlu0.b32.cont [12/16] 0.0, 128
    %283 = vxpose.xlu0.b32.cont [13/16] 0.0, 128
    %284 = vxpose.xlu0.b32.cont [14/16] 0.0, 128
    %285 = vxpose.xlu0.b32.cont [15/16] 0.0, 128
    %286 = vxpose.xlu0.b32.end [16/16] 0.0, 128
    %v287 = vpop.trf.xlu0
    %v288 = vpop.trf.xlu0
    %v289 = vpop.trf.xlu0
    %v290 = vpop.trf.xlu0
    %v291 = vpop.trf.xlu0
    %v292 = vpop.trf.xlu0
    %v293 = vpop.trf.xlu0
    %v294 = vpop.trf.xlu0
    %v295 = vpop.trf.xlu0
    %v296 = vpop.trf.xlu0
    %v297 = vpop.trf.xlu0
    %v298 = vpop.trf.xlu0
    %v299 = vpop.trf.xlu0
    %v300 = vpop.trf.xlu0
    %v301 = vpop.trf.xlu0
    %v302 = vpop.trf.xlu0
    %v304 = vsel %vm86, %v287, 0
    %v307 = vsel %vm86, %v23, 0
    %309 = vmatprep.subr.mxu0 0.0
    %310 = vmatpush1.xpose.msra.mxu0 %v307
    %311 = vmatprep.subr.mxu0 0.0
    %312 = vmatpush1.xpose.msra.mxu0 0.0
    %313 = vmatprep.subr.mxu0 0.0
    %314 = vmatpush1.xpose.msra.mxu0 0.0
    %315 = vmatprep.subr.mxu0 0.0
    %316 = vmatpush1.xpose.msra.mxu0 0.0
    %317 = vmatprep.subr.mxu0 0.0
    %318 = vmatpush1.xpose.msra.mxu0 0.0
    %319 = vmatprep.subr.mxu0 0.0
    %320 = vmatpush1.xpose.msra.mxu0 0.0
    %321 = vmatprep.subr.mxu0 0.0
    %322 = vmatpush1.xpose.msra.mxu0 0.0
    %323 = vmatprep.subr.mxu0 0.0
    %324 = vmatpush1.xpose.msra.mxu0 0.0
    %325 = vmatprep.subr.mxu0 0.0
    %326 = vmatpush1.xpose.msra.mxu0 0.0
    %327 = vmatprep.subr.mxu0 0.0
    %328 = vmatpush1.xpose.msra.mxu0 0.0
    %329 = vmatprep.subr.mxu0 0.0
    %330 = vmatpush1.xpose.msra.mxu0 0.0
    %331 = vmatprep.subr.mxu0 0.0
    %332 = vmatpush1.xpose.msra.mxu0 0.0
    %333 = vmatprep.subr.mxu0 0.0
    %334 = vmatpush1.xpose.msra.mxu0 0.0
    %335 = vmatprep.subr.mxu0 0.0
    %336 = vmatpush1.xpose.msra.mxu0 0.0
    %337 = vmatprep.subr.mxu0 0.0
    %338 = vmatpush1.xpose.msra.mxu0 0.0
    %339 = vmatprep.subr.mxu0 0.0
    %340 = vmatpush1.xpose.msra.mxu0 0.0
    %341 = vmatprep.subr.mxu0 0.0
    %342 = vmatpush1.xpose.msra.mxu0 0.0
    %343 = vmatprep.subr.mxu0 0.0
    %344 = vmatpush1.xpose.msra.mxu0 0.0
    %345 = vmatprep.subr.mxu0 0.0
    %346 = vmatpush1.xpose.msra.mxu0 0.0
    %347 = vmatprep.subr.mxu0 0.0
    %348 = vmatpush1.xpose.msra.mxu0 0.0
    %349 = vmatprep.subr.mxu0 0.0
    %350 = vmatpush1.xpose.msra.mxu0 0.0
    %351 = vmatprep.subr.mxu0 0.0
    %352 = vmatpush1.xpose.msra.mxu0 0.0
    %353 = vmatprep.subr.mxu0 0.0
    %354 = vmatpush1.xpose.msra.mxu0 0.0
    %355 = vmatprep.subr.mxu0 0.0
    %356 = vmatpush1.xpose.msra.mxu0 0.0
    %357 = vmatprep.subr.mxu0 0.0
    %358 = vmatpush1.xpose.msra.mxu0 0.0
    %359 = vmatprep.subr.mxu0 0.0
    %360 = vmatpush1.xpose.msra.mxu0 0.0
    %361 = vmatprep.subr.mxu0 0.0
    %362 = vmatpush1.xpose.msra.mxu0 0.0
    %363 = vmatprep.subr.mxu0 0.0
    %364 = vmatpush1.xpose.msra.mxu0 0.0
    %365 = vmatprep.subr.mxu0 0.0
    %366 = vmatpush1.xpose.msra.mxu0 0.0
    %367 = vmatprep.subr.mxu0 0.0
    %368 = vmatpush1.xpose.msra.mxu0 0.0
    %369 = vmatprep.subr.mxu0 0.0
    %370 = vmatpush1.xpose.msra.mxu0 0.0
    %371 = vmatprep.subr.mxu0 0.0
    %372 = vmatpush1.xpose.msra.mxu0 0.0
    %373 = vmatprep.mubr.f32.mxu0 0.0
    %374 = vmatmul.mubr.f32.gmra.mrb[0].mxu0 %v304
    %v375 = vpop.f32.mrb[0].mxu0
    %v376 = vadd.f32 0.0, %v375
    %v377 = vpop.f32.mrb[0].mxu0
    %378 = vdwg.mxu0
    %v379 = vmul.f32 %v17, %v160
    %v380 = vmul.f32 %v18, %v268
    %v381 = vmul.f32 %v19, %v376
    %v382 = vsel %vm86, %v379, 0.0
    %383 = vadd.xlane.f32.xlu0 %v382
    %v384 = vpop.xlane.xlu0 %383
    %v385 = vsel %vm86, %v380, 0.0
    %386 = vadd.xlane.f32.xlu0 %v385
    %v387 = vpop.xlane.xlu0 %386
    %v388 = vsel %vm86, %v381, 0.0
    %389 = vadd.xlane.f32.xlu0 %v388
    %v390 = vpop.xlane.xlu0 %389
    %v394 = vlaneseq
    %v395 = vand.u32 %v394, 127
    %v396 = vlaneseq
    %v397 = vshrl.u32 %v396, 7
    %v398 = vsub.s32 %v395, %v397
    %v399 = vrot.slane %v384, %v398
    %v400 = vlaneseq
    %v401 = vshrl.u32 %v400, 7
    %v402 = vsub.s32 %v395, %v401
    %v403 = vrot.slane %v387, %v402
    %v404 = vlaneseq
    %v405 = vshrl.u32 %v404, 7
    %v406 = vsub.s32 %v395, %v405
    %v407 = vrot.slane %v390, %v406
    %vm408 = vcmask 1041409
    %v409 = vsel %vm408, %v403, %v399
    %vm410 = vcmask 1042434
    %v411 = vsel %vm410, %v407, %v409
    %vm413 = vcmask 59392
    %414 = vst.msk [vmem:[%s3] sm:$0x7] %vm413, %v411
    %415 = vxpose.xlu0.b32.start [1/16] %v42, 128
    %416 = vxpose.xlu0.b32.cont [2/16] %v43, 128
    %417 = vxpose.xlu0.b32.cont [3/16] 0.0, 128
    %418 = vxpose.xlu0.b32.cont [4/16] 0.0, 128
    %419 = vxpose.xlu0.b32.cont [5/16] 0.0, 128
    %420 = vxpose.xlu0.b32.cont [6/16] 0.0, 128
    %421 = vxpose.xlu0.b32.cont [7/16] 0.0, 128
    %422 = vxpose.xlu0.b32.cont [8/16] 0.0, 128
    %423 = vxpose.xlu0.b32.cont [9/16] 0.0, 128
    %424 = vxpose.xlu0.b32.cont [10/16] 0.0, 128
    %425 = vxpose.xlu0.b32.cont [11/16] 0.0, 128
    %426 = vxpose.xlu0.b32.cont [12/16] 0.0, 128
    %427 = vxpose.xlu0.b32.cont [13/16] 0.0, 128
    %428 = vxpose.xlu0.b32.cont [14/16] 0.0, 128
    %429 = vxpose.xlu0.b32.cont [15/16] 0.0, 128
    %430 = vxpose.xlu0.b32.end [16/16] 0.0, 128
    %v431 = vpop.trf.xlu0
    %v432 = vpop.trf.xlu0
    %v433 = vpop.trf.xlu0
    %v434 = vpop.trf.xlu0
    %v435 = vpop.trf.xlu0
    %v436 = vpop.trf.xlu0
    %v437 = vpop.trf.xlu0
    %v438 = vpop.trf.xlu0
    %v439 = vpop.trf.xlu0
    %v440 = vpop.trf.xlu0
    %v441 = vpop.trf.xlu0
    %v442 = vpop.trf.xlu0
    %v443 = vpop.trf.xlu0
    %v444 = vpop.trf.xlu0
    %v445 = vpop.trf.xlu0
    %v446 = vpop.trf.xlu0
    %vm447 = vcmask 130048
    %v449 = vsel %vm447, %v431, 0
    %v452 = vsel %vm447, %v432, 0
    %v455 = vsel %vm447, %v35, 0
    %v458 = vsel %vm447, %v36, 0
    %460 = vmatprep.subr.mxu0 0.0
    %461 = vmatpush1.xpose.msra.mxu0 %v455
    %462 = vmatprep.subr.mxu0 0.0
    %463 = vmatpush1.xpose.msra.mxu0 %v458
    %464 = vmatprep.subr.mxu0 0.0
    %465 = vmatpush1.xpose.msra.mxu0 0.0
    %466 = vmatprep.subr.mxu0 0.0
    %467 = vmatpush1.xpose.msra.mxu0 0.0
    %468 = vmatprep.subr.mxu0 0.0
    %469 = vmatpush1.xpose.msra.mxu0 0.0
    %470 = vmatprep.subr.mxu0 0.0
    %471 = vmatpush1.xpose.msra.mxu0 0.0
    %472 = vmatprep.subr.mxu0 0.0
    %473 = vmatpush1.xpose.msra.mxu0 0.0
    %474 = vmatprep.subr.mxu0 0.0
    %475 = vmatpush1.xpose.msra.mxu0 0.0
    %476 = vmatprep.subr.mxu0 0.0
    %477 = vmatpush1.xpose.msra.mxu0 0.0
    %478 = vmatprep.subr.mxu0 0.0
    %479 = vmatpush1.xpose.msra.mxu0 0.0
    %480 = vmatprep.subr.mxu0 0.0
    %481 = vmatpush1.xpose.msra.mxu0 0.0
    %482 = vmatprep.subr.mxu0 0.0
    %483 = vmatpush1.xpose.msra.mxu0 0.0
    %484 = vmatprep.subr.mxu0 0.0
    %485 = vmatpush1.xpose.msra.mxu0 0.0
    %486 = vmatprep.subr.mxu0 0.0
    %487 = vmatpush1.xpose.msra.mxu0 0.0
    %488 = vmatprep.subr.mxu0 0.0
    %489 = vmatpush1.xpose.msra.mxu0 0.0
    %490 = vmatprep.subr.mxu0 0.0
    %491 = vmatpush1.xpose.msra.mxu0 0.0
    %492 = vmatprep.subr.mxu0 0.0
    %493 = vmatpush1.xpose.msra.mxu0 0.0
    %494 = vmatprep.subr.mxu0 0.0
    %495 = vmatpush1.xpose.msra.mxu0 0.0
    %496 = vmatprep.subr.mxu0 0.0
    %497 = vmatpush1.xpose.msra.mxu0 0.0
    %498 = vmatprep.subr.mxu0 0.0
    %499 = vmatpush1.xpose.msra.mxu0 0.0
    %500 = vmatprep.subr.mxu0 0.0
    %501 = vmatpush1.xpose.msra.mxu0 0.0
    %502 = vmatprep.subr.mxu0 0.0
    %503 = vmatpush1.xpose.msra.mxu0 0.0
    %504 = vmatprep.subr.mxu0 0.0
    %505 = vmatpush1.xpose.msra.mxu0 0.0
    %506 = vmatprep.subr.mxu0 0.0
    %507 = vmatpush1.xpose.msra.mxu0 0.0
    %508 = vmatprep.subr.mxu0 0.0
    %509 = vmatpush1.xpose.msra.mxu0 0.0
    %510 = vmatprep.subr.mxu0 0.0
    %511 = vmatpush1.xpose.msra.mxu0 0.0
    %512 = vmatprep.subr.mxu0 0.0
    %513 = vmatpush1.xpose.msra.mxu0 0.0
    %514 = vmatprep.subr.mxu0 0.0
    %515 = vmatpush1.xpose.msra.mxu0 0.0
    %516 = vmatprep.subr.mxu0 0.0
    %517 = vmatpush1.xpose.msra.mxu0 0.0
    %518 = vmatprep.subr.mxu0 0.0
    %519 = vmatpush1.xpose.msra.mxu0 0.0
    %520 = vmatprep.subr.mxu0 0.0
    %521 = vmatpush1.xpose.msra.mxu0 0.0
    %522 = vmatprep.subr.mxu0 0.0
    %523 = vmatpush1.xpose.msra.mxu0 0.0
    %524 = vmatprep.mubr.f32.mxu0 0.0
    %525 = vmatmul.mubr.f32.gmra.mrb[0].mxu0 %v449
    %v526 = vpop.f32.mrb[0].mxu0
    %v527 = vadd.f32 0.0, %v526
    %v528 = vpop.f32.mrb[0].mxu0
    %529 = vmatprep.mubr.f32.mxu0 0.0
    %530 = vmatmul.mubr.f32.gmra.mrb[0].mxu0 %v452
    %v531 = vpop.f32.mrb[0].mxu0
    %v532 = vadd.f32 0.0, %v531
    %v533 = vpop.f32.mrb[0].mxu0
    %534 = vdwg.mxu0
    %535 = vxpose.xlu0.b32.start [1/16] %v44, 128
    %536 = vxpose.xlu0.b32.cont [2/16] %v45, 128
    %537 = vxpose.xlu0.b32.cont [3/16] 0.0, 128
    %538 = vxpose.xlu0.b32.cont [4/16] 0.0, 128
    %539 = vxpose.xlu0.b32.cont [5/16] 0.0, 128
    %540 = vxpose.xlu0.b32.cont [6/16] 0.0, 128
    %541 = vxpose.xlu0.b32.cont [7/16] 0.0, 128
    %542 = vxpose.xlu0.b32.cont [8/16] 0.0, 128
    %543 = vxpose.xlu0.b32.cont [9/16] 0.0, 128
    %544 = vxpose.xlu0.b32.cont [10/16] 0.0, 128
    %545 = vxpose.xlu0.b32.cont [11/16] 0.0, 128
    %546 = vxpose.xlu0.b32.cont [12/16] 0.0, 128
    %547 = vxpose.xlu0.b32.cont [13/16] 0.0, 128
    %548 = vxpose.xlu0.b32.cont [14/16] 0.0, 128
    %549 = vxpose.xlu0.b32.cont [15/16] 0.0, 128
    %550 = vxpose.xlu0.b32.end [16/16] 0.0, 128
    %v551 = vpop.trf.xlu0
    %v552 = vpop.trf.xlu0
    %v553 = vpop.trf.xlu0
    %v554 = vpop.trf.xlu0
    %v555 = vpop.trf.xlu0
    %v556 = vpop.trf.xlu0
    %v557 = vpop.trf.xlu0
    %v558 = vpop.trf.xlu0
    %v559 = vpop.trf.xlu0
    %v560 = vpop.trf.xlu0
    %v561 = vpop.trf.xlu0
    %v562 = vpop.trf.xlu0
    %v563 = vpop.trf.xlu0
    %v564 = vpop.trf.xlu0
    %v565 = vpop.trf.xlu0
    %v566 = vpop.trf.xlu0
    %v568 = vsel %vm447, %v551, 0
    %v571 = vsel %vm447, %v552, 0
    %v574 = vsel %vm447, %v37, 0
    %v577 = vsel %vm447, %v38, 0
    %579 = vmatprep.subr.mxu0 0.0
    %580 = vmatpush1.xpose.msra.mxu0 %v574
    %581 = vmatprep.subr.mxu0 0.0
    %582 = vmatpush1.xpose.msra.mxu0 %v577
    %583 = vmatprep.subr.mxu0 0.0
    %584 = vmatpush1.xpose.msra.mxu0 0.0
    %585 = vmatprep.subr.mxu0 0.0
    %586 = vmatpush1.xpose.msra.mxu0 0.0
    %587 = vmatprep.subr.mxu0 0.0
    %588 = vmatpush1.xpose.msra.mxu0 0.0
    %589 = vmatprep.subr.mxu0 0.0
    %590 = vmatpush1.xpose.msra.mxu0 0.0
    %591 = vmatprep.subr.mxu0 0.0
    %592 = vmatpush1.xpose.msra.mxu0 0.0
    %593 = vmatprep.subr.mxu0 0.0
    %594 = vmatpush1.xpose.msra.mxu0 0.0
    %595 = vmatprep.subr.mxu0 0.0
    %596 = vmatpush1.xpose.msra.mxu0 0.0
    %597 = vmatprep.subr.mxu0 0.0
    %598 = vmatpush1.xpose.msra.mxu0 0.0
    %599 = vmatprep.subr.mxu0 0.0
    %600 = vmatpush1.xpose.msra.mxu0 0.0
    %601 = vmatprep.subr.mxu0 0.0
    %602 = vmatpush1.xpose.msra.mxu0 0.0
    %603 = vmatprep.subr.mxu0 0.0
    %604 = vmatpush1.xpose.msra.mxu0 0.0
    %605 = vmatprep.subr.mxu0 0.0
    %606 = vmatpush1.xpose.msra.mxu0 0.0
    %607 = vmatprep.subr.mxu0 0.0
    %608 = vmatpush1.xpose.msra.mxu0 0.0
    %609 = vmatprep.subr.mxu0 0.0
    %610 = vmatpush1.xpose.msra.mxu0 0.0
    %611 = vmatprep.subr.mxu0 0.0
    %612 = vmatpush1.xpose.msra.mxu0 0.0
    %613 = vmatprep.subr.mxu0 0.0
    %614 = vmatpush1.xpose.msra.mxu0 0.0
    %615 = vmatprep.subr.mxu0 0.0
    %616 = vmatpush1.xpose.msra.mxu0 0.0
    %617 = vmatprep.subr.mxu0 0.0
    %618 = vmatpush1.xpose.msra.mxu0 0.0
    %619 = vmatprep.subr.mxu0 0.0
    %620 = vmatpush1.xpose.msra.mxu0 0.0
    %621 = vmatprep.subr.mxu0 0.0
    %622 = vmatpush1.xpose.msra.mxu0 0.0
    %623 = vmatprep.subr.mxu0 0.0
    %624 = vmatpush1.xpose.msra.mxu0 0.0
    %625 = vmatprep.subr.mxu0 0.0
    %626 = vmatpush1.xpose.msra.mxu0 0.0
    %627 = vmatprep.subr.mxu0 0.0
    %628 = vmatpush1.xpose.msra.mxu0 0.0
    %629 = vmatprep.subr.mxu0 0.0
    %630 = vmatpush1.xpose.msra.mxu0 0.0
    %631 = vmatprep.subr.mxu0 0.0
    %632 = vmatpush1.xpose.msra.mxu0 0.0
    %633 = vmatprep.subr.mxu0 0.0
    %634 = vmatpush1.xpose.msra.mxu0 0.0
    %635 = vmatprep.subr.mxu0 0.0
    %636 = vmatpush1.xpose.msra.mxu0 0.0
    %637 = vmatprep.subr.mxu0 0.0
    %638 = vmatpush1.xpose.msra.mxu0 0.0
    %639 = vmatprep.subr.mxu0 0.0
    %640 = vmatpush1.xpose.msra.mxu0 0.0
    %641 = vmatprep.subr.mxu0 0.0
    %642 = vmatpush1.xpose.msra.mxu0 0.0
    %643 = vmatprep.mubr.f32.mxu0 0.0
    %644 = vmatmul.mubr.f32.gmra.mrb[0].mxu0 %v568
    %v645 = vpop.f32.mrb[0].mxu0
    %v646 = vadd.f32 0.0, %v645
    %v647 = vpop.f32.mrb[0].mxu0
    %648 = vmatprep.mubr.f32.mxu0 0.0
    %649 = vmatmul.mubr.f32.gmra.mrb[0].mxu0 %v571
    %v650 = vpop.f32.mrb[0].mxu0
    %v651 = vadd.f32 0.0, %v650
    %v652 = vpop.f32.mrb[0].mxu0
    %653 = vdwg.mxu0
    %654 = vxpose.xlu0.b32.start [1/16] %v46, 128
    %655 = vxpose.xlu0.b32.cont [2/16] %v47, 128
    %656 = vxpose.xlu0.b32.cont [3/16] 0.0, 128
    %657 = vxpose.xlu0.b32.cont [4/16] 0.0, 128
    %658 = vxpose.xlu0.b32.cont [5/16] 0.0, 128
    %659 = vxpose.xlu0.b32.cont [6/16] 0.0, 128
    %660 = vxpose.xlu0.b32.cont [7/16] 0.0, 128
    %661 = vxpose.xlu0.b32.cont [8/16] 0.0, 128
    %662 = vxpose.xlu0.b32.cont [9/16] 0.0, 128
    %663 = vxpose.xlu0.b32.cont [10/16] 0.0, 128
    %664 = vxpose.xlu0.b32.cont [11/16] 0.0, 128
    %665 = vxpose.xlu0.b32.cont [12/16] 0.0, 128
    %666 = vxpose.xlu0.b32.cont [13/16] 0.0, 128
    %667 = vxpose.xlu0.b32.cont [14/16] 0.0, 128
    %668 = vxpose.xlu0.b32.cont [15/16] 0.0, 128
    %669 = vxpose.xlu0.b32.end [16/16] 0.0, 128
    %v670 = vpop.trf.xlu0
    %v671 = vpop.trf.xlu0
    %v672 = vpop.trf.xlu0
    %v673 = vpop.trf.xlu0
    %v674 = vpop.trf.xlu0
    %v675 = vpop.trf.xlu0
    %v676 = vpop.trf.xlu0
    %v677 = vpop.trf.xlu0
    %v678 = vpop.trf.xlu0
    %v679 = vpop.trf.xlu0
    %v680 = vpop.trf.xlu0
    %v681 = vpop.trf.xlu0
    %v682 = vpop.trf.xlu0
    %v683 = vpop.trf.xlu0
    %v684 = vpop.trf.xlu0
    %v685 = vpop.trf.xlu0
    %v687 = vsel %vm447, %v670, 0
    %v690 = vsel %vm447, %v671, 0
    %v693 = vsel %vm447, %v39, 0
    %v696 = vsel %vm447, %v40, 0
    %698 = vmatprep.subr.mxu0 0.0
    %699 = vmatpush1.xpose.msra.mxu0 %v693
    %700 = vmatprep.subr.mxu0 0.0
    %701 = vmatpush1.xpose.msra.mxu0 %v696
    %702 = vmatprep.subr.mxu0 0.0
    %703 = vmatpush1.xpose.msra.mxu0 0.0
    %704 = vmatprep.subr.mxu0 0.0
    %705 = vmatpush1.xpose.msra.mxu0 0.0
    %706 = vmatprep.subr.mxu0 0.0
    %707 = vmatpush1.xpose.msra.mxu0 0.0
    %708 = vmatprep.subr.mxu0 0.0
    %709 = vmatpush1.xpose.msra.mxu0 0.0
    %710 = vmatprep.subr.mxu0 0.0
    %711 = vmatpush1.xpose.msra.mxu0 0.0
    %712 = vmatprep.subr.mxu0 0.0
    %713 = vmatpush1.xpose.msra.mxu0 0.0
    %714 = vmatprep.subr.mxu0 0.0
    %715 = vmatpush1.xpose.msra.mxu0 0.0
    %716 = vmatprep.subr.mxu0 0.0
    %717 = vmatpush1.xpose.msra.mxu0 0.0
    %718 = vmatprep.subr.mxu0 0.0
    %719 = vmatpush1.xpose.msra.mxu0 0.0
    %720 = vmatprep.subr.mxu0 0.0
    %721 = vmatpush1.xpose.msra.mxu0 0.0
    %722 = vmatprep.subr.mxu0 0.0
    %723 = vmatpush1.xpose.msra.mxu0 0.0
    %724 = vmatprep.subr.mxu0 0.0
    %725 = vmatpush1.xpose.msra.mxu0 0.0
    %726 = vmatprep.subr.mxu0 0.0
    %727 = vmatpush1.xpose.msra.mxu0 0.0
    %728 = vmatprep.subr.mxu0 0.0
    %729 = vmatpush1.xpose.msra.mxu0 0.0
    %730 = vmatprep.subr.mxu0 0.0
    %731 = vmatpush1.xpose.msra.mxu0 0.0
    %732 = vmatprep.subr.mxu0 0.0
    %733 = vmatpush1.xpose.msra.mxu0 0.0
    %734 = vmatprep.subr.mxu0 0.0
    %735 = vmatpush1.xpose.msra.mxu0 0.0
    %736 = vmatprep.subr.mxu0 0.0
    %737 = vmatpush1.xpose.msra.mxu0 0.0
    %738 = vmatprep.subr.mxu0 0.0
    %739 = vmatpush1.xpose.msra.mxu0 0.0
    %740 = vmatprep.subr.mxu0 0.0
    %741 = vmatpush1.xpose.msra.mxu0 0.0
    %742 = vmatprep.subr.mxu0 0.0
    %743 = vmatpush1.xpose.msra.mxu0 0.0
    %744 = vmatprep.subr.mxu0 0.0
    %745 = vmatpush1.xpose.msra.mxu0 0.0
    %746 = vmatprep.subr.mxu0 0.0
    %747 = vmatpush1.xpose.msra.mxu0 0.0
    %748 = vmatprep.subr.mxu0 0.0
    %749 = vmatpush1.xpose.msra.mxu0 0.0
    %750 = vmatprep.subr.mxu0 0.0
    %751 = vmatpush1.xpose.msra.mxu0 0.0
    %752 = vmatprep.subr.mxu0 0.0
    %753 = vmatpush1.xpose.msra.mxu0 0.0
    %754 = vmatprep.subr.mxu0 0.0
    %755 = vmatpush1.xpose.msra.mxu0 0.0
    %756 = vmatprep.subr.mxu0 0.0
    %757 = vmatpush1.xpose.msra.mxu0 0.0
    %758 = vmatprep.subr.mxu0 0.0
    %759 = vmatpush1.xpose.msra.mxu0 0.0
    %760 = vmatprep.subr.mxu0 0.0
    %761 = vmatpush1.xpose.msra.mxu0 0.0
    %762 = vmatprep.mubr.f32.mxu0 0.0
    %763 = vmatmul.mubr.f32.gmra.mrb[0].mxu0 %v687
    %v764 = vpop.f32.mrb[0].mxu0
    %v765 = vadd.f32 0.0, %v764
    %v766 = vpop.f32.mrb[0].mxu0
    %767 = vmatprep.mubr.f32.mxu0 0.0
    %768 = vmatmul.mubr.f32.gmra.mrb[0].mxu0 %v690
    %v769 = vpop.f32.mrb[0].mxu0
    %v770 = vadd.f32 0.0, %v769
    %v771 = vpop.f32.mrb[0].mxu0
    %772 = vdwg.mxu0
    %v773 = vmul.f32 %v28, %v527
    %v774 = vmul.f32 %v29, %v532
    %v775 = vmul.f32 %v30, %v646
    %v776 = vmul.f32 %v31, %v651
    %v777 = vmul.f32 %v32, %v765
    %v778 = vmul.f32 %v33, %v770
    %v779 = vsel %vm447, %v773, 0.0
    %780 = vadd.xlane.f32.xlu0 %v779
    %v781 = vpop.xlane.xlu0 %780
    %v782 = vsel %vm447, %v774, 0.0
    %783 = vadd.xlane.f32.xlu0 %v782
    %v784 = vpop.xlane.xlu0 %783
    %v785 = vsel %vm447, %v775, 0.0
    %786 = vadd.xlane.f32.xlu0 %v785
    %v787 = vpop.xlane.xlu0 %786
    %v788 = vsel %vm447, %v776, 0.0
    %789 = vadd.xlane.f32.xlu0 %v788
    %v790 = vpop.xlane.xlu0 %789
    %v791 = vsel %vm447, %v777, 0.0
    %792 = vadd.xlane.f32.xlu0 %v791
    %v793 = vpop.xlane.xlu0 %792
    %v794 = vsel %vm447, %v778, 0.0
    %795 = vadd.xlane.f32.xlu0 %v794
    %v796 = vpop.xlane.xlu0 %795
    %v797 = vmul.f32 %v781, 0.3
    %v798 = vmul.f32 %v784, 0.3
    %v799 = vmul.f32 %v787, 0.3
    %v800 = vmul.f32 %v790, 0.3
    %v801 = vmul.f32 %v793, 0.3
    %v802 = vmul.f32 %v796, 0.3
    %v803 = vadd.f32 %v797, 1.0
    %v804 = vadd.f32 %v798, 1.0
    %v805 = vadd.f32 %v799, 1.0
    %v806 = vadd.f32 %v800, 1.0
    %v807 = vadd.f32 %v801, 1.0
    %v808 = vadd.f32 %v802, 1.0
    %v809 = vmul.f32 %v48, %v803
    %v810 = vmul.f32 %v49, %v804
    %v811 = vmul.f32 %v50, %v805
    %v812 = vmul.f32 %v51, %v806
    %v813 = vmul.f32 %v52, %v807
    %v814 = vmul.f32 %v53, %v808
    %vm815 = vcmask 261120
    %v816 = vsel %vm815, %v809, 0.0
    %817 = vadd.xlane.f32.xlu0 %v816
    %v818 = vpop.xlane.xlu0 %817
    %v819 = vsel %vm815, %v810, 0.0
    %820 = vadd.xlane.f32.xlu0 %v819
    %v821 = vpop.xlane.xlu0 %820
    %v822 = vsel %vm815, %v811, 0.0
    %823 = vadd.xlane.f32.xlu0 %v822
    %v824 = vpop.xlane.xlu0 %823
    %v825 = vsel %vm815, %v812, 0.0
    %826 = vadd.xlane.f32.xlu0 %v825
    %v827 = vpop.xlane.xlu0 %826
    %v828 = vsel %vm815, %v813, 0.0
    %829 = vadd.xlane.f32.xlu0 %v828
    %v830 = vpop.xlane.xlu0 %829
    %v831 = vsel %vm815, %v814, 0.0
    %832 = vadd.xlane.f32.xlu0 %v831
    %v833 = vpop.xlane.xlu0 %832
    %v834 = vrcp.pop 32.0
    %v835 = vmul.f32 %v818, %v834
    %v836 = vmul.f32 %v821, %v834
    %v837 = vmul.f32 %v824, %v834
    %v838 = vmul.f32 %v827, %v834
    %v839 = vmul.f32 %v830, %v834
    %v840 = vmul.f32 %v833, %v834
    %v841 = vsub.f32 %v809, %v835
    %v842 = vsub.f32 %v810, %v836
    %v843 = vsub.f32 %v811, %v837
    %v844 = vsub.f32 %v812, %v838
    %v845 = vsub.f32 %v813, %v839
    %v846 = vsub.f32 %v814, %v840
    %v848 = vsel %vm815, %v841, 0
    %v851 = vsel %vm815, %v842, 0
    %853 = vmatprep.subr.mxu0 0.0
    %854 = vmatpush1.xpose.msra.mxu0 %v848
    %855 = vmatprep.subr.mxu0 0.0
    %856 = vmatpush1.xpose.msra.mxu0 %v851
    %857 = vmatprep.subr.mxu0 0.0
    %858 = vmatpush1.xpose.msra.mxu0 0.0
    %859 = vmatprep.subr.mxu0 0.0
    %860 = vmatpush1.xpose.msra.mxu0 0.0
    %861 = vmatprep.subr.mxu0 0.0
    %862 = vmatpush1.xpose.msra.mxu0 0.0
    %863 = vmatprep.subr.mxu0 0.0
    %864 = vmatpush1.xpose.msra.mxu0 0.0
    %865 = vmatprep.subr.mxu0 0.0
    %866 = vmatpush1.xpose.msra.mxu0 0.0
    %867 = vmatprep.subr.mxu0 0.0
    %868 = vmatpush1.xpose.msra.mxu0 0.0
    %869 = vmatprep.subr.mxu0 0.0
    %870 = vmatpush1.xpose.msra.mxu0 0.0
    %871 = vmatprep.subr.mxu0 0.0
    %872 = vmatpush1.xpose.msra.mxu0 0.0
    %873 = vmatprep.subr.mxu0 0.0
    %874 = vmatpush1.xpose.msra.mxu0 0.0
    %875 = vmatprep.subr.mxu0 0.0
    %876 = vmatpush1.xpose.msra.mxu0 0.0
    %877 = vmatprep.subr.mxu0 0.0
    %878 = vmatpush1.xpose.msra.mxu0 0.0
    %879 = vmatprep.subr.mxu0 0.0
    %880 = vmatpush1.xpose.msra.mxu0 0.0
    %881 = vmatprep.subr.mxu0 0.0
    %882 = vmatpush1.xpose.msra.mxu0 0.0
    %883 = vmatprep.subr.mxu0 0.0
    %884 = vmatpush1.xpose.msra.mxu0 0.0
    %885 = vmatprep.subr.mxu0 0.0
    %886 = vmatpush1.xpose.msra.mxu0 0.0
    %887 = vmatprep.subr.mxu0 0.0
    %888 = vmatpush1.xpose.msra.mxu0 0.0
    %889 = vmatprep.subr.mxu0 0.0
    %890 = vmatpush1.xpose.msra.mxu0 0.0
    %891 = vmatprep.subr.mxu0 0.0
    %892 = vmatpush1.xpose.msra.mxu0 0.0
    %893 = vmatprep.subr.mxu0 0.0
    %894 = vmatpush1.xpose.msra.mxu0 0.0
    %895 = vmatprep.subr.mxu0 0.0
    %896 = vmatpush1.xpose.msra.mxu0 0.0
    %897 = vmatprep.subr.mxu0 0.0
    %898 = vmatpush1.xpose.msra.mxu0 0.0
    %899 = vmatprep.subr.mxu0 0.0
    %900 = vmatpush1.xpose.msra.mxu0 0.0
    %901 = vmatprep.subr.mxu0 0.0
    %902 = vmatpush1.xpose.msra.mxu0 0.0
    %903 = vmatprep.subr.mxu0 0.0
    %904 = vmatpush1.xpose.msra.mxu0 0.0
    %905 = vmatprep.subr.mxu0 0.0
    %906 = vmatpush1.xpose.msra.mxu0 0.0
    %907 = vmatprep.subr.mxu0 0.0
    %908 = vmatpush1.xpose.msra.mxu0 0.0
    %909 = vmatprep.subr.mxu0 0.0
    %910 = vmatpush1.xpose.msra.mxu0 0.0
    %911 = vmatprep.subr.mxu0 0.0
    %912 = vmatpush1.xpose.msra.mxu0 0.0
    %913 = vmatprep.subr.mxu0 0.0
    %914 = vmatpush1.xpose.msra.mxu0 0.0
    %915 = vmatprep.subr.mxu0 0.0
    %916 = vmatpush1.xpose.msra.mxu0 0.0
    %917 = vmatprep.mubr.f32.mxu0 0.0
    %918 = vmatmul.mubr.f32.gmra.mrb[0].mxu0 %v848
    %v919 = vpop.f32.mrb[0].mxu0
    %v920 = vadd.f32 0.0, %v919
    %v921 = vpop.f32.mrb[0].mxu0
    %922 = vmatprep.mubr.f32.mxu0 0.0
    %923 = vmatmul.mubr.f32.gmra.mrb[0].mxu0 %v851
    %v924 = vpop.f32.mrb[0].mxu0
    %v925 = vadd.f32 0.0, %v924
    %v926 = vpop.f32.mrb[0].mxu0
    %927 = vdwg.mxu0
    %v929 = vsel %vm815, %v843, 0
    %v932 = vsel %vm815, %v844, 0
    %934 = vmatprep.subr.mxu0 0.0
    %935 = vmatpush1.xpose.msra.mxu0 %v929
    %936 = vmatprep.subr.mxu0 0.0
    %937 = vmatpush1.xpose.msra.mxu0 %v932
    %938 = vmatprep.subr.mxu0 0.0
    %939 = vmatpush1.xpose.msra.mxu0 0.0
    %940 = vmatprep.subr.mxu0 0.0
    %941 = vmatpush1.xpose.msra.mxu0 0.0
    %942 = vmatprep.subr.mxu0 0.0
    %943 = vmatpush1.xpose.msra.mxu0 0.0
    %944 = vmatprep.subr.mxu0 0.0
    %945 = vmatpush1.xpose.msra.mxu0 0.0
    %946 = vmatprep.subr.mxu0 0.0
    %947 = vmatpush1.xpose.msra.mxu0 0.0
    %948 = vmatprep.subr.mxu0 0.0
    %949 = vmatpush1.xpose.msra.mxu0 0.0
    %950 = vmatprep.subr.mxu0 0.0
    %951 = vmatpush1.xpose.msra.mxu0 0.0
    %952 = vmatprep.subr.mxu0 0.0
    %953 = vmatpush1.xpose.msra.mxu0 0.0
    %954 = vmatprep.subr.mxu0 0.0
    %955 = vmatpush1.xpose.msra.mxu0 0.0
    %956 = vmatprep.subr.mxu0 0.0
    %957 = vmatpush1.xpose.msra.mxu0 0.0
    %958 = vmatprep.subr.mxu0 0.0
    %959 = vmatpush1.xpose.msra.mxu0 0.0
    %960 = vmatprep.subr.mxu0 0.0
    %961 = vmatpush1.xpose.msra.mxu0 0.0
    %962 = vmatprep.subr.mxu0 0.0
    %963 = vmatpush1.xpose.msra.mxu0 0.0
    %964 = vmatprep.subr.mxu0 0.0
    %965 = vmatpush1.xpose.msra.mxu0 0.0
    %966 = vmatprep.subr.mxu0 0.0
    %967 = vmatpush1.xpose.msra.mxu0 0.0
    %968 = vmatprep.subr.mxu0 0.0
    %969 = vmatpush1.xpose.msra.mxu0 0.0
    %970 = vmatprep.subr.mxu0 0.0
    %971 = vmatpush1.xpose.msra.mxu0 0.0
    %972 = vmatprep.subr.mxu0 0.0
    %973 = vmatpush1.xpose.msra.mxu0 0.0
    %974 = vmatprep.subr.mxu0 0.0
    %975 = vmatpush1.xpose.msra.mxu0 0.0
    %976 = vmatprep.subr.mxu0 0.0
    %977 = vmatpush1.xpose.msra.mxu0 0.0
    %978 = vmatprep.subr.mxu0 0.0
    %979 = vmatpush1.xpose.msra.mxu0 0.0
    %980 = vmatprep.subr.mxu0 0.0
    %981 = vmatpush1.xpose.msra.mxu0 0.0
    %982 = vmatprep.subr.mxu0 0.0
    %983 = vmatpush1.xpose.msra.mxu0 0.0
    %984 = vmatprep.subr.mxu0 0.0
    %985 = vmatpush1.xpose.msra.mxu0 0.0
    %986 = vmatprep.subr.mxu0 0.0
    %987 = vmatpush1.xpose.msra.mxu0 0.0
    %988 = vmatprep.subr.mxu0 0.0
    %989 = vmatpush1.xpose.msra.mxu0 0.0
    %990 = vmatprep.subr.mxu0 0.0
    %991 = vmatpush1.xpose.msra.mxu0 0.0
    %992 = vmatprep.subr.mxu0 0.0
    %993 = vmatpush1.xpose.msra.mxu0 0.0
    %994 = vmatprep.subr.mxu0 0.0
    %995 = vmatpush1.xpose.msra.mxu0 0.0
    %996 = vmatprep.subr.mxu0 0.0
    %997 = vmatpush1.xpose.msra.mxu0 0.0
    %998 = vmatprep.mubr.f32.mxu0 0.0
    %999 = vmatmul.mubr.f32.gmra.mrb[0].mxu0 %v929
    %v1000 = vpop.f32.mrb[0].mxu0
    %v1001 = vadd.f32 0.0, %v1000
    %v1002 = vpop.f32.mrb[0].mxu0
    %1003 = vmatprep.mubr.f32.mxu0 0.0
    %1004 = vmatmul.mubr.f32.gmra.mrb[0].mxu0 %v932
    %v1005 = vpop.f32.mrb[0].mxu0
    %v1006 = vadd.f32 0.0, %v1005
    %v1007 = vpop.f32.mrb[0].mxu0
    %1008 = vdwg.mxu0
    %v1010 = vsel %vm815, %v845, 0
    %v1013 = vsel %vm815, %v846, 0
    %1015 = vmatprep.subr.mxu0 0.0
    %1016 = vmatpush1.xpose.msra.mxu0 %v1010
    %1017 = vmatprep.subr.mxu0 0.0
    %1018 = vmatpush1.xpose.msra.mxu0 %v1013
    %1019 = vmatprep.subr.mxu0 0.0
    %1020 = vmatpush1.xpose.msra.mxu0 0.0
    %1021 = vmatprep.subr.mxu0 0.0
    %1022 = vmatpush1.xpose.msra.mxu0 0.0
    %1023 = vmatprep.subr.mxu0 0.0
    %1024 = vmatpush1.xpose.msra.mxu0 0.0
    %1025 = vmatprep.subr.mxu0 0.0
    %1026 = vmatpush1.xpose.msra.mxu0 0.0
    %1027 = vmatprep.subr.mxu0 0.0
    %1028 = vmatpush1.xpose.msra.mxu0 0.0
    %1029 = vmatprep.subr.mxu0 0.0
    %1030 = vmatpush1.xpose.msra.mxu0 0.0
    %1031 = vmatprep.subr.mxu0 0.0
    %1032 = vmatpush1.xpose.msra.mxu0 0.0
    %1033 = vmatprep.subr.mxu0 0.0
    %1034 = vmatpush1.xpose.msra.mxu0 0.0
    %1035 = vmatprep.subr.mxu0 0.0
    %1036 = vmatpush1.xpose.msra.mxu0 0.0
    %1037 = vmatprep.subr.mxu0 0.0
    %1038 = vmatpush1.xpose.msra.mxu0 0.0
    %1039 = vmatprep.subr.mxu0 0.0
    %1040 = vmatpush1.xpose.msra.mxu0 0.0
    %1041 = vmatprep.subr.mxu0 0.0
    %1042 = vmatpush1.xpose.msra.mxu0 0.0
    %1043 = vmatprep.subr.mxu0 0.0
    %1044 = vmatpush1.xpose.msra.mxu0 0.0
    %1045 = vmatprep.subr.mxu0 0.0
    %1046 = vmatpush1.xpose.msra.mxu0 0.0
    %1047 = vmatprep.subr.mxu0 0.0
    %1048 = vmatpush1.xpose.msra.mxu0 0.0
    %1049 = vmatprep.subr.mxu0 0.0
    %1050 = vmatpush1.xpose.msra.mxu0 0.0
    %1051 = vmatprep.subr.mxu0 0.0
    %1052 = vmatpush1.xpose.msra.mxu0 0.0
    %1053 = vmatprep.subr.mxu0 0.0
    %1054 = vmatpush1.xpose.msra.mxu0 0.0
    %1055 = vmatprep.subr.mxu0 0.0
    %1056 = vmatpush1.xpose.msra.mxu0 0.0
    %1057 = vmatprep.subr.mxu0 0.0
    %1058 = vmatpush1.xpose.msra.mxu0 0.0
    %1059 = vmatprep.subr.mxu0 0.0
    %1060 = vmatpush1.xpose.msra.mxu0 0.0
    %1061 = vmatprep.subr.mxu0 0.0
    %1062 = vmatpush1.xpose.msra.mxu0 0.0
    %1063 = vmatprep.subr.mxu0 0.0
    %1064 = vmatpush1.xpose.msra.mxu0 0.0
    %1065 = vmatprep.subr.mxu0 0.0
    %1066 = vmatpush1.xpose.msra.mxu0 0.0
    %1067 = vmatprep.subr.mxu0 0.0
    %1068 = vmatpush1.xpose.msra.mxu0 0.0
    %1069 = vmatprep.subr.mxu0 0.0
    %1070 = vmatpush1.xpose.msra.mxu0 0.0
    %1071 = vmatprep.subr.mxu0 0.0
    %1072 = vmatpush1.xpose.msra.mxu0 0.0
    %1073 = vmatprep.subr.mxu0 0.0
    %1074 = vmatpush1.xpose.msra.mxu0 0.0
    %1075 = vmatprep.subr.mxu0 0.0
    %1076 = vmatpush1.xpose.msra.mxu0 0.0
    %1077 = vmatprep.subr.mxu0 0.0
    %1078 = vmatpush1.xpose.msra.mxu0 0.0
    %1079 = vmatprep.mubr.f32.mxu0 0.0
    %1080 = vmatmul.mubr.f32.gmra.mrb[0].mxu0 %v1010
    %v1081 = vpop.f32.mrb[0].mxu0
    %v1082 = vadd.f32 0.0, %v1081
    %v1083 = vpop.f32.mrb[0].mxu0
    %1084 = vmatprep.mubr.f32.mxu0 0.0
    %1085 = vmatmul.mubr.f32.gmra.mrb[0].mxu0 %v1013
    %v1086 = vpop.f32.mrb[0].mxu0
    %v1087 = vadd.f32 0.0, %v1086
    %v1088 = vpop.f32.mrb[0].mxu0
    %1089 = vdwg.mxu0
    %v1090 = vlaneseq
    %v1091 = vshrl.u32 %v1090, 7
    %v1092 = vadd.s32 %v1091, 8
    %vm1093 = vcmp.eq.s32.totalorder %v1091, %v395
    %vm1094 = vcmp.eq.s32.totalorder %v1092, %v395
    %v1095 = vsel %vm1093, 1, 0
    %v1096 = vsel %vm1094, 1, 0
    %v1097 = vcvt.s32.f32 %v1095
    %v1098 = vcvt.s32.f32 %v1096
    %v1099 = vmul.f32 %v920, %v1097
    %v1100 = vmul.f32 %v925, %v1098
    %v1101 = vmul.f32 %v1001, %v1097
    %v1102 = vmul.f32 %v1006, %v1098
    %v1103 = vmul.f32 %v1082, %v1097
    %v1104 = vmul.f32 %v1087, %v1098
    %v1105 = vsel %vm447, %v1099, 0.0
    %1106 = vadd.xlane.f32.xlu0 %v1105
    %v1107 = vpop.xlane.xlu0 %1106
    %v1108 = vsel %vm447, %v1100, 0.0
    %1109 = vadd.xlane.f32.xlu0 %v1108
    %v1110 = vpop.xlane.xlu0 %1109
    %v1111 = vsel %vm447, %v1101, 0.0
    %1112 = vadd.xlane.f32.xlu0 %v1111
    %v1113 = vpop.xlane.xlu0 %1112
    %v1114 = vsel %vm447, %v1102, 0.0
    %1115 = vadd.xlane.f32.xlu0 %v1114
    %v1116 = vpop.xlane.xlu0 %1115
    %v1117 = vsel %vm447, %v1103, 0.0
    %1118 = vadd.xlane.f32.xlu0 %v1117
    %v1119 = vpop.xlane.xlu0 %1118
    %v1120 = vsel %vm447, %v1104, 0.0
    %1121 = vadd.xlane.f32.xlu0 %v1120
    %v1122 = vpop.xlane.xlu0 %1121
    %v1123 = vrsqrt.pop %v1107
    %v1124 = vrsqrt.pop %v1110
    %v1125 = vrsqrt.pop %v1113
    %v1126 = vrsqrt.pop %v1116
    %v1127 = vrsqrt.pop %v1119
    %v1128 = vrsqrt.pop %v1122
    %v1129 = vadd.f32 %v1105, %v1108
    %v1130 = vrot.slane %v1129, 4
    %v1131 = vadd.f32 %v1129, %v1130
    %v1132 = vrot.slane %v1131, 2
    %v1133 = vadd.f32 %v1131, %v1132
    %v1134 = vrot.slane %v1133, 1
    %v1135 = vadd.f32 %v1133, %v1134
    %v1136 = vadd.f32 %v1111, %v1114
    %v1137 = vrot.slane %v1136, 4
    %v1138 = vadd.f32 %v1136, %v1137
    %v1139 = vrot.slane %v1138, 2
    %v1140 = vadd.f32 %v1138, %v1139
    %v1141 = vrot.slane %v1140, 1
    %v1142 = vadd.f32 %v1140, %v1141
    %v1143 = vadd.f32 %v1117, %v1120
    %v1144 = vrot.slane %v1143, 4
    %v1145 = vadd.f32 %v1143, %v1144
    %v1146 = vrot.slane %v1145, 2
    %v1147 = vadd.f32 %v1145, %v1146
    %v1148 = vrot.slane %v1147, 1
    %v1149 = vadd.f32 %v1147, %v1148
    %v1150 = vrsqrt.pop %v1135
    %v1151 = vrsqrt.pop %v1142
    %v1152 = vrsqrt.pop %v1149
    %v1153 = vmul.f32 %v920, %v1123
    %v1154 = vmul.f32 %v925, %v1124
    %v1155 = vmul.f32 %v1001, %v1125
    %v1156 = vmul.f32 %v1006, %v1126
    %v1157 = vmul.f32 %v1082, %v1127
    %v1158 = vmul.f32 %v1087, %v1128
    %v1159 = vmul.f32 %v1153, %v1150
    %v1160 = vmul.f32 %v1154, %v1150
    %v1161 = vmul.f32 %v1155, %v1151
    %v1162 = vmul.f32 %v1156, %v1151
    %v1163 = vmul.f32 %v1157, %v1152
    %v1164 = vmul.f32 %v1158, %v1152
    %1165 = vst.msk [vmem:[#allocation2] sm:$0xff] %vm447, %v1159
    %1166 = vst.msk [vmem:[#allocation2 + $0x8] sm:$0xff] %vm447, %v1160
    %1167 = vst.msk [vmem:[#allocation2 + $0x10] sm:$0xff] %vm447, %v1161
    %1168 = vst.msk [vmem:[#allocation2 + $0x18] sm:$0xff] %vm447, %v1162
    %1169 = vst.msk [vmem:[#allocation2 + $0x20] sm:$0xff] %vm447, %v1163
    %1170 = vst.msk [vmem:[#allocation2 + $0x28] sm:$0xff] %vm447, %v1164
    // Predicated region
    $region14: #{generator_forward.1} parent=1 // pred_check
      _
    $region15: #{generator_forward.1} parent=1 // pred_check_branch
      %1172 = sbr.rel (0) target = $region17
    $region16: #{generator_forward.1} parent=1 // pred_region
      _
    $region17: #{generator_forward.1} parent=1 // pred_fallthru
      _
    // Predicated region
    $region18: #{generator_forward.1} parent=1 // pred_check
      _
    $region19: #{generator_forward.1} parent=1 // pred_check_branch
      %1174 = sbr.rel (0) target = $region21
    $region20: #{generator_forward.1} parent=1 // pred_region
      %s1176 = ssub.s32 768, 768
      %1177 = vsyncadd [#allocation3], %s1176
      %s1178 = sshll.u32 [#allocation2], 4
      %s1179 = int_to_ptr.vmem [resolvable:$true] %s1178
      %1184 = dma.vmem_to_hbm [thread:$0]  %s1179, 768, %s4, [#allocation3], 128, 128, 8
    $region21: #{generator_forward.1} parent=1 // pred_fallthru
      _
    // Predicated region
    $region22: #{generator_forward.1} parent=1 // pred_check
      _
    $region23: #{generator_forward.1} parent=1 // pred_check_branch
      %1186 = sbr.rel (0) target = $region25
    $region24: #{generator_forward.1} parent=1 // pred_region
      _
    $region25: #{generator_forward.1} parent=1 // pred_fallthru
      _
    // Predicated region
    $region26: #{generator_forward.1} parent=1 // pred_check
      _
    $region27: #{generator_forward.1} parent=1 // pred_check_branch
      %1188 = sbr.rel (0) target = $region29
    $region28: #{generator_forward.1} parent=1 // pred_region
      %1189 = dma.done [#allocation3], 768
    $region29: #{generator_forward.1} parent=1 // pred_fallthru
      _
    %1190 = vsyncpa [#allocation3], 1

</llo_original>
